<compile_context>
chip_gen: v6e
topology: v6e:2x2x1
jax: 0.10.0
libtpu: 0.0.40
codegen_flags: <defaults>
</compile_context>

<pallas_src>
import functools
import math

import jax
import jax.numpy as jnp
from jax.experimental import pallas as pl
from jax.experimental.pallas import tpu as pltpu

_LOGP_LO = math.log(1e-8)
_LOGP_HI = math.log(1.0 - 1e-8)


def _focal_kernel(logit_ref, target_ref, out_ref, *, C, gamma, class_weight,
                  tr, valid_pixels, needs_mask):
    """Process one (TB, C, TR, 128) logits block + (TB, TR, 128) targets block."""
    t = target_ref[...]                                   # (TB, TR, 128) int32
    uniform_w = all(float(cw) == 1.0 for cw in class_weight)

    def plane(c):
        # Read one class plane straight from the pipelined input buffer.
        return logit_ref[:, c, :, :].astype(jnp.float32)  # (TB, TR, 128)

    # Numerically stable softmax statistics over the (small) class axis,
    # fully unrolled: VPU/EUP only, no XLU.
    m = plane(0)
    for c in range(1, C):
        m = jnp.maximum(m, plane(c))

    denom = jnp.zeros_like(m)        # sum_c exp(x_c - m)
    num = jnp.zeros_like(m)          # exp(x_t - m)
    xt = jnp.zeros_like(m)           # selected logit x_t
    w = None if uniform_w else jnp.zeros_like(m)
    for c in range(C):
        xc = plane(c)
        e_c = jnp.exp(xc - m)
        denom = denom + e_c
        sel = (t == c)
        num = jnp.where(sel, e_c, num)
        xt = jnp.where(sel, xc, xt)
        if not uniform_w:
            w = jnp.where(sel, jnp.float32(class_weight[c]), w)

    # Exact log(p); clip(log p) == log(clip(p, 1e-8, 1 - 1e-8)) (log monotone).
    logp = (xt - m) - jnp.log(denom)
    logp = jnp.clip(logp, jnp.float32(_LOGP_LO), jnp.float32(_LOGP_HI))

    # Focus term: approx reciprocal on the EUP is fine here (error only enters
    # the polynomial factor) and issues in parallel with the log above.
    p = num * pl.reciprocal(denom, approx=True)
    one_minus_p = jnp.clip(1.0 - p, 0.0, 1.0)
    g = float(gamma)
    if g == 2.0:
        focus = one_minus_p * one_minus_p     # <= 1, so clip(., 0, 2) is a no-op
    elif g == 1.0:
        focus = one_minus_p
    else:
        focus = jnp.clip(jnp.power(one_minus_p, jnp.float32(g)), 0.0, 2.0)

    loss = -focus * logp
    if not uniform_w:
        loss = w * loss

    if needs_mask:
        # Padded pixels only exist in the last pixel-row tile of each batch
        # element; mask only there (gated with pl.when).
        j = pl.program_id(1)
        last = pl.num_programs(1) - 1

        @pl.when(j != last)
        def _():
            out_ref[...] = jnp.sum(loss, axis=(0, 1), keepdims=True)

        @pl.when(j == last)
        def _():
            row = jax.lax.broadcasted_iota(jnp.int32, loss.shape, 1)
            lane = jax.lax.broadcasted_iota(jnp.int32, loss.shape, 2)
            pix = (j * tr + row) * 128 + lane          # per-batch pixel index
            out_ref[...] = jnp.sum(jnp.where(pix < valid_pixels, loss, 0.0),
                                   axis=(0, 1), keepdims=True)
    else:
        out_ref[...] = jnp.sum(loss, axis=(0, 1), keepdims=True)


def _vmem_capacity_bytes():
    try:
        info = pltpu.get_tpu_info()
        cap = getattr(info, "vmem_capacity_bytes", None)
        if cap:
            return int(cap)
    except Exception:
        pass
    return 64 * 1024 * 1024        # conservative (v7x-sized) fallback


def _plan_tiles(B, C, R, itemsize, tile_budget):
    """Pick (tb, tr, pad_rows): batch fold, pixel-row tile, extra row padding."""
    row_bytes = C * 128 * itemsize
    sub = max(8, 32 // itemsize)                 # sublane multiple (8 f32, 16 bf16)
    per_batch = R * row_bytes
    if per_batch <= tile_budget:
        # Small images: fold several batch elements per grid step (full R).
        tb = min(B, max(1, tile_budget // per_batch))
        if B > 1:
            tb = min(tb, max(1, B // 2))         # keep >=2 grid steps for megacore
        while B % tb:
            tb -= 1
        return tb, R, 0
    max_rows = max(sub, (tile_budget // row_bytes) // sub * sub)
    if R <= max_rows:
        return 1, R, 0
    for cand in range(max_rows, sub - 1, -sub):  # prefer a divisor of R (no pad)
        if R % cand == 0:
            return 1, cand, 0
    return 1, max_rows, (-R) % max_rows


def robust_focal_loss_2d(logit, target, class_weight=None, gamma=2.0):
    """Mean focal loss (PyTorch RobustFocalLoss2d, type='softmax', size_average=True)."""
    B, C, H, W = logit.shape
    P = H * W
    N = B * P

    if class_weight is None:
        class_weight = (1.0,) * C
    class_weight = tuple(float(cw) for cw in class_weight)

    x = logit.reshape(B, C, P)                   # contiguous reshape, no transpose
    t = target.astype(jnp.int32).reshape(B, P)

    itemsize = jnp.dtype(x.dtype).itemsize
    vmem_total = _vmem_capacity_bytes()
    tile_budget = int(max(2 << 20, min(8 << 20, vmem_total // 16)))
    vmem_limit = int(min(vmem_total * 3 // 4, max(48 << 20, 8 * tile_budget)))

    R = (P + 127) // 128
    tb, tr, pad_rows = _plan_tiles(B, C, R, itemsize, tile_budget)
    r_pad = R + pad_rows
    p_pad = r_pad * 128
    if p_pad != P:
        x = jnp.pad(x, ((0, 0), (0, 0), (0, p_pad - P)))
        t = jnp.pad(t, ((0, 0), (0, p_pad - P)))
    x = x.reshape(B, C, r_pad, 128)              # lane-dense layout
    t = t.reshape(B, r_pad, 128)

    gb, gr = B // tb, r_pad // tr
    needs_mask = p_pad != P

    kernel = functools.partial(
        _focal_kernel, C=C, gamma=float(gamma), class_weight=class_weight,
        tr=tr, valid_pixels=P, needs_mask=needs_mask)

    cost = pl.CostEstimate(
        flops=int((6 * C + 12) * B * P),
        transcendentals=int((C + 2) * B * P),
        bytes_accessed=int(B * C * p_pad * itemsize + B * p_pad * 4
                           + gb * gr * 128 * 4))

    partials = pl.pallas_call(
        kernel,
        out_shape=jax.ShapeDtypeStruct((gb, gr, 128), jnp.float32),
        grid_spec=pltpu.PrefetchScalarGridSpec(
            num_scalar_prefetch=0,
            grid=(gb, gr),
            in_specs=[
                pl.BlockSpec((tb, C, tr, 128), lambda b, j: (b, 0, j, 0)),  # logits
                pl.BlockSpec((tb, tr, 128), lambda b, j: (b, j, 0)),        # targets
            ],
            out_specs=pl.BlockSpec((1, 1, 128), lambda b, j: (b, j, 0)),
        ),
        compiler_params=pltpu.CompilerParams(
            dimension_semantics=("parallel", "parallel"),
            vmem_limit_bytes=vmem_limit),
        cost_estimate=cost,
    )(x, t)

    # Final reduction of per-lane, per-tile partial sums in plain JAX.
    return jnp.sum(partials) / jnp.float32(N)
    # TODO(synk): type='sigmoid' and size_average=False (per-pixel loss) paths
    # of the PyTorch module are not implemented; only softmax + mean.


def _reference(logit, target, class_weight=None, gamma=2.0):
    B, C, H, W = logit.shape
    x = jnp.transpose(logit, (0, 2, 3, 1)).reshape(-1, C).astype(jnp.float32)
    t = target.reshape(-1).astype(jnp.int32)
    prob = jax.nn.softmax(x, axis=1)
    p = jnp.take_along_axis(prob, t[:, None], axis=1)
    p = jnp.clip(p, 1e-8, 1.0 - 1e-8)
    focus = jnp.clip(jnp.power(1.0 - p, gamma), 0.0, 2.0)
    if class_weight is None:
        w = jnp.ones_like(p)
    else:
        w = jnp.asarray(class_weight, jnp.float32)[t][:, None]
    return jnp.mean(-w * focus * jnp.log(p))


if __name__ == "__main__":
    key = jax.random.PRNGKey(0)
    k1, k2 = jax.random.split(key)

    # Case 1: base shape, uniform class weights, gamma=2.
    B, C, H, W = 2, 4, 16, 16
    logit = jax.random.normal(k1, (B, C, H, W), dtype=jnp.float32)
    target = jax.random.randint(k2, (B, H, W), 0, C, dtype=jnp.int32)
    out = jax.block_until_ready(robust_focal_loss_2d(logit, target, gamma=2.0))
    ref = _reference(logit, target, gamma=2.0)
    assert jnp.allclose(out, ref, atol=1e-3, rtol=1e-3), (out, ref)

    # Case 2: pixel count not a multiple of 128 -> exercises pad + mask path.
    k3, k4 = jax.random.split(k1)
    B2, C2, H2, W2 = 2, 3, 7, 9
    logit2 = jax.random.normal(k3, (B2, C2, H2, W2), dtype=jnp.float32)
    target2 = jax.random.randint(k4, (B2, H2, W2), 0, C2, dtype=jnp.int32)
    out2 = jax.block_until_ready(robust_focal_loss_2d(logit2, target2, gamma=2.0))
    ref2 = _reference(logit2, target2, gamma=2.0)
    assert jnp.allclose(out2, ref2, atol=1e-3, rtol=1e-3), (out2, ref2)

    # Case 3: non-uniform class weights.
    cw = (1.0, 2.0, 0.5, 1.5)
    out3 = jax.block_until_ready(
        robust_focal_loss_2d(logit, target, class_weight=cw, gamma=2.0))
    ref3 = _reference(logit, target, class_weight=cw, gamma=2.0)
    assert jnp.allclose(out3, ref3, atol=1e-3, rtol=1e-3), (out3, ref3)

    print("KERNEL_OK")
</pallas_src>

<mosaic_0001>
module attributes {stable_mosaic.version = 11 : i64} {
  func.func @_focal_kernel(%arg0: i32, %arg1: i32, %arg2: memref<1x4x2x128xf32, #tpu.memory_space<vmem>>, %arg3: memref<1x2x128xi32, #tpu.memory_space<vmem>>, %arg4: memref<1x1x128xf32, #tpu.memory_space<vmem>>) attributes {dimension_semantics = [#tpu.dimension_semantics<parallel>, #tpu.dimension_semantics<parallel>], iteration_bounds = array<i64: 2, 1>, scalar_prefetch = 0 : i64, scratch_operands = 0 : i64, tpu.core_type = #tpu.core_type<tc>, window_params = [{transform_indices = @transform_0, window_bounds = array<i64: 1, 4, 2, 128>}, {transform_indices = @transform_1, window_bounds = array<i64: 1, 2, 128>}, {transform_indices = @transform_2, window_bounds = array<i64: 1, 1, 128>}]} {
    %c0 = arith.constant 0 : index
    %c0_0 = arith.constant 0 : index
    %c0_1 = arith.constant 0 : index
    %0 = vector.load %arg3[%c0, %c0_0, %c0_1] : memref<1x2x128xi32, #tpu.memory_space<vmem>>, vector<1x2x128xi32>
    %c0_2 = arith.constant 0 : index
    %c0_3 = arith.constant 0 : index
    %c0_4 = arith.constant 0 : index
    %c0_5 = arith.constant 0 : index
    %1 = vector.load %arg2[%c0_2, %c0_3, %c0_4, %c0_5] : memref<1x4x2x128xf32, #tpu.memory_space<vmem>>, vector<1x1x2x128xf32>
    %2 = vector.shape_cast %1 : vector<1x1x2x128xf32> to vector<1x2x128xf32>
    %c0_6 = arith.constant 0 : index
    %c1 = arith.constant 1 : index
    %c0_7 = arith.constant 0 : index
    %c0_8 = arith.constant 0 : index
    %3 = vector.load %arg2[%c0_6, %c1, %c0_7, %c0_8] : memref<1x4x2x128xf32, #tpu.memory_space<vmem>>, vector<1x1x2x128xf32>
    %4 = vector.shape_cast %3 : vector<1x1x2x128xf32> to vector<1x2x128xf32>
    %5 = arith.maximumf %2, %4 : vector<1x2x128xf32>
    %c0_9 = arith.constant 0 : index
    %c2 = arith.constant 2 : index
    %c0_10 = arith.constant 0 : index
    %c0_11 = arith.constant 0 : index
    %6 = vector.load %arg2[%c0_9, %c2, %c0_10, %c0_11] : memref<1x4x2x128xf32, #tpu.memory_space<vmem>>, vector<1x1x2x128xf32>
    %7 = vector.shape_cast %6 : vector<1x1x2x128xf32> to vector<1x2x128xf32>
    %8 = arith.maximumf %5, %7 : vector<1x2x128xf32>
    %c0_12 = arith.constant 0 : index
    %c3 = arith.constant 3 : index
    %c0_13 = arith.constant 0 : index
    %c0_14 = arith.constant 0 : index
    %9 = vector.load %arg2[%c0_12, %c3, %c0_13, %c0_14] : memref<1x4x2x128xf32, #tpu.memory_space<vmem>>, vector<1x1x2x128xf32>
    %10 = vector.shape_cast %9 : vector<1x1x2x128xf32> to vector<1x2x128xf32>
    %11 = arith.maximumf %8, %10 : vector<1x2x128xf32>
    %cst = arith.constant 0.000000e+00 : f32
    %12 = vector.broadcast %cst : f32 to vector<1x2x128xf32>
    %cst_15 = arith.constant 0.000000e+00 : f32
    %13 = vector.broadcast %cst_15 : f32 to vector<1x2x128xf32>
    %cst_16 = arith.constant 0.000000e+00 : f32
    %14 = vector.broadcast %cst_16 : f32 to vector<1x2x128xf32>
    %c0_17 = arith.constant 0 : index
    %c0_18 = arith.constant 0 : index
    %c0_19 = arith.constant 0 : index
    %c0_20 = arith.constant 0 : index
    %15 = vector.load %arg2[%c0_17, %c0_18, %c0_19, %c0_20] : memref<1x4x2x128xf32, #tpu.memory_space<vmem>>, vector<1x1x2x128xf32>
    %16 = vector.shape_cast %15 : vector<1x1x2x128xf32> to vector<1x2x128xf32>
    %17 = arith.subf %16, %11 : vector<1x2x128xf32>
    %18 = math.exp %17 : vector<1x2x128xf32>
    %19 = arith.addf %12, %18 : vector<1x2x128xf32>
    %c0_i32 = arith.constant 0 : i32
    %20 = vector.broadcast %c0_i32 : i32 to vector<1x2x128xi32>
    %21 = arith.cmpi eq, %0, %20 : vector<1x2x128xi32>
    %22 = arith.select %21, %18, %13 : vector<1x2x128xi1>, vector<1x2x128xf32>
    %23 = arith.select %21, %16, %14 : vector<1x2x128xi1>, vector<1x2x128xf32>
    %c0_21 = arith.constant 0 : index
    %c1_22 = arith.constant 1 : index
    %c0_23 = arith.constant 0 : index
    %c0_24 = arith.constant 0 : index
    %24 = vector.load %arg2[%c0_21, %c1_22, %c0_23, %c0_24] : memref<1x4x2x128xf32, #tpu.memory_space<vmem>>, vector<1x1x2x128xf32>
    %25 = vector.shape_cast %24 : vector<1x1x2x128xf32> to vector<1x2x128xf32>
    %26 = arith.subf %25, %11 : vector<1x2x128xf32>
    %27 = math.exp %26 : vector<1x2x128xf32>
    %28 = arith.addf %19, %27 : vector<1x2x128xf32>
    %c1_i32 = arith.constant 1 : i32
    %29 = vector.broadcast %c1_i32 : i32 to vector<1x2x128xi32>
    %30 = arith.cmpi eq, %0, %29 : vector<1x2x128xi32>
    %31 = arith.select %30, %27, %22 : vector<1x2x128xi1>, vector<1x2x128xf32>
    %32 = arith.select %30, %25, %23 : vector<1x2x128xi1>, vector<1x2x128xf32>
    %c0_25 = arith.constant 0 : index
    %c2_26 = arith.constant 2 : index
    %c0_27 = arith.constant 0 : index
    %c0_28 = arith.constant 0 : index
    %33 = vector.load %arg2[%c0_25, %c2_26, %c0_27, %c0_28] : memref<1x4x2x128xf32, #tpu.memory_space<vmem>>, vector<1x1x2x128xf32>
    %34 = vector.shape_cast %33 : vector<1x1x2x128xf32> to vector<1x2x128xf32>
    %35 = arith.subf %34, %11 : vector<1x2x128xf32>
    %36 = math.exp %35 : vector<1x2x128xf32>
    %37 = arith.addf %28, %36 : vector<1x2x128xf32>
    %c2_i32 = arith.constant 2 : i32
    %38 = vector.broadcast %c2_i32 : i32 to vector<1x2x128xi32>
    %39 = arith.cmpi eq, %0, %38 : vector<1x2x128xi32>
    %40 = arith.select %39, %36, %31 : vector<1x2x128xi1>, vector<1x2x128xf32>
    %41 = arith.select %39, %34, %32 : vector<1x2x128xi1>, vector<1x2x128xf32>
    %c0_29 = arith.constant 0 : index
    %c3_30 = arith.constant 3 : index
    %c0_31 = arith.constant 0 : index
    %c0_32 = arith.constant 0 : index
    %42 = vector.load %arg2[%c0_29, %c3_30, %c0_31, %c0_32] : memref<1x4x2x128xf32, #tpu.memory_space<vmem>>, vector<1x1x2x128xf32>
    %43 = vector.shape_cast %42 : vector<1x1x2x128xf32> to vector<1x2x128xf32>
    %44 = arith.subf %43, %11 : vector<1x2x128xf32>
    %45 = math.exp %44 : vector<1x2x128xf32>
    %46 = arith.addf %37, %45 : vector<1x2x128xf32>
    %c3_i32 = arith.constant 3 : i32
    %47 = vector.broadcast %c3_i32 : i32 to vector<1x2x128xi32>
    %48 = arith.cmpi eq, %0, %47 : vector<1x2x128xi32>
    %49 = arith.select %48, %45, %40 : vector<1x2x128xi1>, vector<1x2x128xf32>
    %50 = arith.select %48, %43, %41 : vector<1x2x128xi1>, vector<1x2x128xf32>
    %51 = arith.subf %50, %11 : vector<1x2x128xf32>
    %52 = math.log %46 : vector<1x2x128xf32>
    %53 = arith.subf %51, %52 : vector<1x2x128xf32>
    %cst_33 = arith.constant -18.420681 : f32
    %cst_34 = arith.constant -9.99999993E-9 : f32
    %54 = vector.broadcast %cst_33 : f32 to vector<1x2x128xf32>
    %55 = arith.maximumf %54, %53 : vector<1x2x128xf32>
    %56 = vector.broadcast %cst_34 : f32 to vector<1x2x128xf32>
    %57 = arith.minimumf %56, %55 : vector<1x2x128xf32>
    %58 = tpu.reciprocal %46 {approx = true} : vector<1x2x128xf32> -> vector<1x2x128xf32>
    %59 = arith.mulf %49, %58 : vector<1x2x128xf32>
    %cst_35 = arith.constant 1.000000e+00 : f32
    %60 = vector.broadcast %cst_35 : f32 to vector<1x2x128xf32>
    %61 = arith.subf %60, %59 : vector<1x2x128xf32>
    %cst_36 = arith.constant 0.000000e+00 : f32
    %cst_37 = arith.constant 1.000000e+00 : f32
    %62 = vector.broadcast %cst_36 : f32 to vector<1x2x128xf32>
    %63 = arith.maximumf %62, %61 : vector<1x2x128xf32>
    %64 = vector.broadcast %cst_37 : f32 to vector<1x2x128xf32>
    %65 = arith.minimumf %64, %63 : vector<1x2x128xf32>
    %66 = arith.mulf %65, %65 : vector<1x2x128xf32>
    %cst_38 = arith.constant 0.000000e+00 : f32
    %67 = vector.broadcast %cst_38 : f32 to vector<1x2x128xf32>
    %68 = arith.subf %67, %66 : vector<1x2x128xf32>
    %69 = arith.mulf %68, %57 : vector<1x2x128xf32>
    %cst_39 = arith.constant dense<0.000000e+00> : vector<128xf32>
    %70 = vector.multi_reduction <add>, %69, %cst_39 [0, 1] : vector<1x2x128xf32> to vector<128xf32>
    %71 = vector.shape_cast %70 : vector<128xf32> to vector<1x1x128xf32>
    %c0_40 = arith.constant 0 : index
    %c0_41 = arith.constant 0 : index
    %c0_42 = arith.constant 0 : index
    %72 = vector.load %arg4[%c0_40, %c0_41, %c0_42] : memref<1x1x128xf32, #tpu.memory_space<vmem>>, vector<1x1x128xf32>
    tpu.vector_store %arg4[%c0_40, %c0_41, %c0_42], %71 {strides = array<i32>} : memref<1x1x128xf32, #tpu.memory_space<vmem>>, vector<1x1x128xf32>,
    return
  }
  func.func @transform_0(%arg0: i32, %arg1: i32) -> (i32, i32, i32, i32) {
    %c0_i32 = arith.constant 0 : i32
    %c0_i32_0 = arith.constant 0 : i32
    %c0_i32_1 = arith.constant 0 : i32
    return %arg0, %c0_i32, %arg1, %c0_i32_0 : i32, i32, i32, i32
  }
  func.func @transform_1(%arg0: i32, %arg1: i32) -> (i32, i32, i32) {
    %c0_i32 = arith.constant 0 : i32
    %c0_i32_0 = arith.constant 0 : i32
    return %arg0, %arg1, %c0_i32 : i32, i32, i32
  }
  func.func @transform_2(%arg0: i32, %arg1: i32) -> (i32, i32, i32) {
    %c0_i32 = arith.constant 0 : i32
    %c0_i32_0 = arith.constant 0 : i32
    return %arg0, %arg1, %c0_i32 : i32, i32, i32
  }
}

</mosaic_0001>

<llo_original>
// kernel: tpu_custom_call.1
$region0: #{tpu_custom_call.1}
  #allocation0 [shape = 'u32[]', space=smem, size = 0x4, offset = 0x4, fixed_abs, tag = 'smem constant byte address 0x4 - core index']
  #allocation1 [shape = 'u32[144,128]{1,0:T(1,128)}', space=vmem, size = 0x12000, scoped, tag = 'internal scratch']
  %s0 = inlined_call_operand.hbm [shape: f32[2,4,2,128], index: 0, kind: input, shape index: {}]
  %s1 = inlined_call_operand.hbm [shape: s32[2,2,128], index: 1, kind: input, shape index: {}]
  %s2 = inlined_call_operand.hbm [shape: f32[2,1,128], index: 2, kind: output, shape index: {}]
  %s3 = sld [smem:[#allocation0]]
  $region49: #{tpu_custom_call.1} parent=0
    _
  %s5 = ssub.s32 1, %s3
  %s6 = scalar_select 0, %s5, %s3
  $region1: #{tpu_custom_call.1} parent=0
    #allocation2 [shape = 'u8[8192]{0}', space=vmem, size = 0x2000, scoped, tag = 'input window, operand 0']
    #allocation3 [shape = 's32[2]{0}', space=sflag, size = 0x8, scoped, tag = 'scoped memory for tpu_custom_call.1']
    #allocation4 [shape = 's32[2]{0}', space=sflag, size = 0x8, scoped, tag = 'scoped memory for tpu_custom_call.1']
    #allocation5 [shape = 'u8[2048]{0}', space=vmem, size = 0x800, scoped, tag = 'input window, operand 1']
    #allocation6 [shape = 's32[2]{0}', space=sflag, size = 0x8, scoped, tag = 'scoped memory for tpu_custom_call.1']
    #allocation7 [shape = 'u8[1024]{0}', space=vmem, size = 0x400, scoped, tag = 'output window, operand 0']
    %7 = vsyncpa [#allocation3], 0
    %s8 = scalar_lea.sflag [#allocation3], 1
    %9 = vsyncpa %s8, 0
    %10 = vsyncpa [#allocation6], 0
    %s11 = scalar_lea.sflag [#allocation6], 1
    %12 = vsyncpa %s11, 0
    %13 = vsyncpa [#allocation4], 0
    %s14 = scalar_lea.sflag [#allocation4], 1
    %15 = vsyncpa %s14, 0
    loop: start=0, step=1, limit=4
    $region2: #{tpu_custom_call.1} parent=1 // loop_pre_header
      _
    $region3: #{tpu_custom_call.1} parent=1 // loop_header
      %s17 = sphi 0, %s21
      %p18 = scmp.ge.s32.totalorder %s17, 4
      %s24 = sphi 0, %s36
      %s25 = sphi 0, %s32
      %s26 = sphi 0, %s24
      %s27 = sphi 0, %s25
      %s28 = sphi 0, %s26
      %s29 = sphi 0, %s27
      %s41 = sphi 0, %s43
      %s44 = sphi 0, %s41
      %s45 = sphi 0, %s44
      %s61 = sphi 0, %s45
      %s69 = sphi 0, %s71
      %s72 = sphi 0, %s69
      %s73 = sphi 0, %s72
      %s89 = sphi 0, %s73
      %s97 = sphi 0, %s99
      %s100 = sphi 0, %s97
      %s101 = sphi 0, %s100
      %s117 = sphi 0, %s101
    $region4: #{tpu_custom_call.1} parent=1 // loop_header_branch
      %20 = sbr.rel (%p18) target = $region8
    $region5: #{tpu_custom_call.1} parent=1 // loop_body
      %s22 = ssub.s32 %s17, 1
      %s23 = ssub.s32 %s17, 2
      %s30 = sadd.s32 1, %s25
      %p31 = scmp.ge.s32.totalorder %s30, 1
      %s32 = scalar_select %p31, 0, %s30
      %s33 = sadd.s32 1, %s24
      %s34 = scalar_select %p31, %s33, %s24
      %p35 = scmp.ge.s32.totalorder %s34, 2
      %s36 = scalar_select %p35, 0, %s34
      %s37 = ssub.s32 %s24, %s36
      %s38 = ssub.s32 %s25, %s32
      %s39 = sor.u32 %s37, %s38
      %p40 = scmp.eq.s32.totalorder %s39, 0
      %s42 = sadd.s32 %s41, 1
      %s43 = scalar_select %p40, %s41, %s42
      %p46 = pneg %p40
      %p47 = scmp.eq.s32.totalorder %s17, 1
      %p48 = por %p46, %p47
      %p49 = scmp.ne.s32.totalorder %s41, %s44
      %p50 = scmp.eq.s32.totalorder %s17, 0
      %p51 = por %p49, %p50
      %p52 = scmp.ne.s32.totalorder %s41, %s44
      %p53 = scmp.eq.s32.totalorder %s22, 1
      %p54 = por %p52, %p53
      %p55 = scmp.ne.s32.totalorder %s44, %s45
      %p56 = scmp.eq.s32.totalorder %s22, 0
      %p57 = por %p55, %p56
      %p58 = scmp.ne.s32.totalorder %s44, %s45
      %p59 = scmp.eq.s32.totalorder %s23, 1
      %p60 = por %p58, %p59
      %p62 = scmp.ne.s32.totalorder %s45, %s61
      %p63 = scmp.eq.s32.totalorder %s23, 0
      %p64 = por %p62, %p63
      %s65 = ssub.s32 %s24, %s36
      %s66 = ssub.s32 %s25, %s32
      %s67 = sor.u32 %s65, %s66
      %p68 = scmp.eq.s32.totalorder %s67, 0
      %s70 = sadd.s32 %s69, 1
      %s71 = scalar_select %p68, %s69, %s70
      %p74 = pneg %p68
      %p75 = scmp.eq.s32.totalorder %s17, 1
      %p76 = por %p74, %p75
      %p77 = scmp.ne.s32.totalorder %s69, %s72
      %p78 = scmp.eq.s32.totalorder %s17, 0
      %p79 = por %p77, %p78
      %p80 = scmp.ne.s32.totalorder %s69, %s72
      %p81 = scmp.eq.s32.totalorder %s22, 1
      %p82 = por %p80, %p81
      %p83 = scmp.ne.s32.totalorder %s72, %s73
      %p84 = scmp.eq.s32.totalorder %s22, 0
      %p85 = por %p83, %p84
      %p86 = scmp.ne.s32.totalorder %s72, %s73
      %p87 = scmp.eq.s32.totalorder %s23, 1
      %p88 = por %p86, %p87
      %p90 = scmp.ne.s32.totalorder %s73, %s89
      %p91 = scmp.eq.s32.totalorder %s23, 0
      %p92 = por %p90, %p91
      %s93 = ssub.s32 %s24, %s36
      %s94 = ssub.s32 %s25, %s32
      %s95 = sor.u32 %s93, %s94
      %p96 = scmp.eq.s32.totalorder %s95, 0
      %s98 = sadd.s32 %s97, 1
      %s99 = scalar_select %p96, %s97, %s98
      %p102 = pneg %p96
      %p103 = scmp.eq.s32.totalorder %s17, 1
      %p104 = por %p102, %p103
      %p105 = scmp.ne.s32.totalorder %s97, %s100
      %p106 = scmp.eq.s32.totalorder %s17, 0
      %p107 = por %p105, %p106
      %p108 = scmp.ne.s32.totalorder %s97, %s100
      %p109 = scmp.eq.s32.totalorder %s22, 1
      %p110 = por %p108, %p109
      %p111 = scmp.ne.s32.totalorder %s100, %s101
      %p112 = scmp.eq.s32.totalorder %s22, 0
      %p113 = por %p111, %p112
      %p114 = scmp.ne.s32.totalorder %s100, %s101
      %p115 = scmp.eq.s32.totalorder %s23, 1
      %p116 = por %p114, %p115
      %p118 = scmp.ne.s32.totalorder %s101, %s117
      %p119 = scmp.eq.s32.totalorder %s23, 0
      %p120 = por %p118, %p119
      %p121 = scmp.le.s32.totalorder 1, %s17
      %p122 = scmp.lt.s32.totalorder %s17, 3
      %p123 = pnand %p121, %p122
      %p124 = pneg %p123
      // Predicated region
      $region9: #{tpu_custom_call.1} parent=5 // pred_check
        _
      $region10: #{tpu_custom_call.1} parent=5 // pred_check_branch
        %126 = sbr.rel (%p123) target = $region12
      $region11: #{tpu_custom_call.1} parent=5 // pred_region
        %s127 = ssub.s32 %s17, 1
      $region12: #{tpu_custom_call.1} parent=5 // pred_fallthru
        _
      %p128 = scmp.lt.s32.totalorder %s17, 2
      // Predicated region
      $region13: #{tpu_custom_call.1} parent=5 // pred_check
        %p129 = pneg %p128
      $region14: #{tpu_custom_call.1} parent=5 // pred_check_branch
        %131 = sbr.rel (%p129) target = $region16
      $region15: #{tpu_custom_call.1} parent=5 // pred_region
        // Predicated region
        $region17: #{tpu_custom_call.1} parent=15 // pred_check
          %p132 = pneg %p51
        $region18: #{tpu_custom_call.1} parent=15 // pred_check_branch
          %134 = sbr.rel (%p132) target = $region20
        $region19: #{tpu_custom_call.1} parent=15 // pred_region
          %s135 = sand.u32 %s41, 1
          %s136 = scalar_lea.sflag [#allocation3], %s135
          %s137 = sand.u32 %s41, 1
          %s138 = smul.addr %s137, 8
          %s139 = scalar_lea.vmem [#allocation2], %s138
          %s141 = ssub.s32 128, 128
          %142 = vsyncadd %s136, %s141
          %s143 = smul.addr %s24, 4
          %s144 = sadd.s32 %s25, %s143
          %s145 = smul.addr %s144, 32
          %s146 = scalar_lea.hbm %s0, %s145
          %s147 = sshll.u32 %s139, 4
          %s148 = int_to_ptr.vmem [resolvable:$true] %s147
          %153 = dma.hbm_to_vmem [thread:$0]  %s146, 128, %s148, %s136, 32, 32, 2
        $region20: #{tpu_custom_call.1} parent=15 // pred_fallthru
          _
        // Predicated region
        $region21: #{tpu_custom_call.1} parent=15 // pred_check
          %p154 = pneg %p79
        $region22: #{tpu_custom_call.1} parent=15 // pred_check_branch
          %156 = sbr.rel (%p154) target = $region24
        $region23: #{tpu_custom_call.1} parent=15 // pred_region
          %s157 = sand.u32 %s69, 1
          %s158 = scalar_lea.sflag [#allocation6], %s157
          %s159 = sand.u32 %s69, 1
          %s160 = smul.addr %s159, 2
          %s161 = scalar_lea.vmem [#allocation5], %s160
          %s163 = ssub.s32 32, 32
          %164 = vsyncadd %s158, %s163
          %s165 = sadd.s32 %s25, %s24
          %s166 = smul.addr %s165, 32
          %s167 = scalar_lea.hbm %s1, %s166
          %s169 = sshll.u32 %s161, 4
          %s170 = int_to_ptr.vmem [resolvable:$true] %s169
          %172 = dma.hbm_to_vmem [thread:$0]  %s167, 32, %s170, %s158
        $region24: #{tpu_custom_call.1} parent=15 // pred_fallthru
          _
      $region16: #{tpu_custom_call.1} parent=5 // pred_fallthru
        _
      %p173 = scmp.le.s32.totalorder 1, %s17
      %p174 = scmp.lt.s32.totalorder %s17, 3
      %p175 = pnand %p173, %p174
      %p176 = pneg %p175
      // Predicated region
      $region25: #{tpu_custom_call.1} parent=5 // pred_check
        _
      $region26: #{tpu_custom_call.1} parent=5 // pred_check_branch
        %178 = sbr.rel (%p175) target = $region28
      $region27: #{tpu_custom_call.1} parent=5 // pred_region
        %s179 = ssub.s32 %s17, 1
        %s180 = sand.u32 %s44, 1
        %s181 = scalar_lea.sflag [#allocation3], %s180
        %s182 = sand.u32 %s44, 1
        %s183 = smul.addr %s182, 8
        %s184 = scalar_lea.vmem [#allocation2], %s183
        // Predicated region
        $region29: #{tpu_custom_call.1} parent=27 // pred_check
          %p185 = pneg %p57
        $region30: #{tpu_custom_call.1} parent=27 // pred_check_branch
          %187 = sbr.rel (%p185) target = $region32
        $region31: #{tpu_custom_call.1} parent=27 // pred_region
          %188 = dma.done %s181, 128
        $region32: #{tpu_custom_call.1} parent=27 // pred_fallthru
          _
        %s189 = sand.u32 %s72, 1
        %s190 = scalar_lea.sflag [#allocation6], %s189
        %s191 = sand.u32 %s72, 1
        %s192 = smul.addr %s191, 2
        %s193 = scalar_lea.vmem [#allocation5], %s192
        // Predicated region
        $region33: #{tpu_custom_call.1} parent=27 // pred_check
          %p194 = pneg %p85
        $region34: #{tpu_custom_call.1} parent=27 // pred_check_branch
          %196 = sbr.rel (%p194) target = $region36
        $region35: #{tpu_custom_call.1} parent=27 // pred_region
          %197 = dma.done %s190, 32
        $region36: #{tpu_custom_call.1} parent=27 // pred_fallthru
          _
        %s198 = sand.u32 %s44, 1
        %s199 = scalar_lea.sflag [#allocation3], %s198
        %s200 = sand.u32 %s44, 1
        %s201 = smul.addr %s200, 8
        %s202 = scalar_lea.vmem [#allocation2], %s201
        %p203 = pneg %p57
        %p204 = pneg %p54
        %s205 = sand.u32 %s72, 1
        %s206 = scalar_lea.sflag [#allocation6], %s205
        %s207 = sand.u32 %s72, 1
        %s208 = smul.addr %s207, 2
        %s209 = scalar_lea.vmem [#allocation5], %s208
        %p210 = pneg %p85
        %p211 = pneg %p82
        %p212 = pneg %p113
        %p213 = pneg %p110
        %s214 = sand.u32 %s100, 1
        %s215 = scalar_lea.sflag [#allocation4], %s214
        %s216 = sand.u32 %s100, 1
        %s217 = scalar_lea.vmem [#allocation7], %s216
        %v218 = vld [vmem:[%s193] sm:$0x3]
        %v219 = vld [vmem:[%s184] sm:$0x3]
        %s220 = scalar_lea.vmem %s184, 2 [#allocation2]
        %v221 = vld [vmem:[%s220] sm:$0x3]
        %v222 = vmax.f32 %v219, %v221
        %s223 = scalar_lea.vmem %s184, 4 [#allocation2]
        %v224 = vld [vmem:[%s223] sm:$0x3]
        %v225 = vmax.f32 %v222, %v224
        %s226 = scalar_lea.vmem %s184, 6 [#allocation2]
        %v227 = vld [vmem:[%s226] sm:$0x3]
        %v228 = vmax.f32 %v225, %v227
        %v229 = vsub.f32 %v219, %v228
        %v230 = vmul.f32 %v229, 1.442695
        %v231 = vpow.pop %v230
        %v232 = vadd.f32 %v231, 0.0
        %vm233 = vcmp.eq.s32.totalorder %v218, 0
        %v234 = vsel %vm233, %v231, 0.0
        %v235 = vsel %vm233, %v219, 0.0
        %v236 = vsub.f32 %v221, %v228
        %v237 = vmul.f32 %v236, 1.442695
        %v238 = vpow.pop %v237
        %v239 = vadd.f32 %v232, %v238
        %vm240 = vcmp.eq.s32.totalorder %v218, 1
        %v241 = vsel %vm240, %v238, %v234
        %v242 = vsel %vm240, %v221, %v235
        %v243 = vsub.f32 %v224, %v228
        %v244 = vmul.f32 %v243, 1.442695
        %v245 = vpow.pop %v244
        %v246 = vadd.f32 %v239, %v245
        %vm247 = vcmp.eq.s32.totalorder %v218, 2
        %v248 = vsel %vm247, %v245, %v241
        %v249 = vsel %vm247, %v224, %v242
        %v250 = vsub.f32 %v227, %v228
        %v251 = vmul.f32 %v250, 1.442695
        %v252 = vpow.pop %v251
        %v253 = vadd.f32 %v246, %v252
        %vm254 = vcmp.eq.s32.totalorder %v218, 3
        %v255 = vsel %vm254, %v252, %v248
        %v256 = vsel %vm254, %v227, %v249
        %v257 = vsub.f32 %v256, %v228
        %v258 = vlog2.pop %v253
        %v259 = vmul.f32 %v258, 0.6931472
        %v260 = vsub.f32 %v257, %v259
        %v261 = vmax.f32 %v260, -18.420681
        %v262 = vmin.f32 %v261, -1e-08
        %v263 = vrcp.pop %v253
        %v264 = vmul.f32 %v255, %v263
        %v265 = vsub.f32 1.0, %v264
        %v266 = vmax.f32 %v265, 0.0
        %v267 = vmin.f32 %v266, 1.0
        %v268 = vmul.f32 %v267, %v267
        %v269 = vsub.f32 0.0, %v268
        %v270 = vmul.f32 %v269, %v262
        %vm271 = vcmask 1041408
        %v272 = vsel %vm271, %v270, 0.0
        %v273 = vrot.slane %v272, 4
        %v274 = vadd.f32 %v272, %v273
        %v275 = vrot.slane %v274, 2
        %v276 = vadd.f32 %v274, %v275
        %v277 = vrot.slane %v276, 1
        %v278 = vadd.f32 %v276, %v277
        %279 = vst [vmem:[%s217] sm:$0x1] %v278
        %s280 = sand.u32 %s100, 1
        %s281 = scalar_lea.sflag [#allocation4], %s280
        %s282 = sand.u32 %s100, 1
        %s283 = scalar_lea.vmem [#allocation7], %s282
        // Predicated region
        $region37: #{tpu_custom_call.1} parent=27 // pred_check
          %p284 = pneg %p110
        $region38: #{tpu_custom_call.1} parent=27 // pred_check_branch
          %286 = sbr.rel (%p284) target = $region40
        $region39: #{tpu_custom_call.1} parent=27 // pred_region
          %s288 = ssub.s32 16, 16
          %289 = vsyncadd %s281, %s288
          %s290 = sadd.s32 %s27, %s26
          %s291 = smul.addr %s290, 16
          %s292 = scalar_lea.hbm %s2, %s291
          %s294 = sshll.u32 %s283, 4
          %s295 = int_to_ptr.vmem [resolvable:$true] %s294
          %297 = dma.vmem_to_hbm [thread:$0]  %s295, 16, %s292, %s281
        $region40: #{tpu_custom_call.1} parent=27 // pred_fallthru
          _
      $region28: #{tpu_custom_call.1} parent=5 // pred_fallthru
        _
      %p298 = scmp.le.s32.totalorder 2, %s17
      // Predicated region
      $region41: #{tpu_custom_call.1} parent=5 // pred_check
        %p299 = pneg %p298
      $region42: #{tpu_custom_call.1} parent=5 // pred_check_branch
        %301 = sbr.rel (%p299) target = $region44
      $region43: #{tpu_custom_call.1} parent=5 // pred_region
        %s302 = ssub.s32 %s17, 2
        // Predicated region
        $region45: #{tpu_custom_call.1} parent=43 // pred_check
          %p303 = pneg %p116
        $region46: #{tpu_custom_call.1} parent=43 // pred_check_branch
          %305 = sbr.rel (%p303) target = $region48
        $region47: #{tpu_custom_call.1} parent=43 // pred_region
          %s306 = sand.u32 %s101, 1
          %s307 = scalar_lea.sflag [#allocation4], %s306
          %s308 = sand.u32 %s101, 1
          %s309 = scalar_lea.vmem [#allocation7], %s308
          %310 = dma.done %s307, 16
        $region48: #{tpu_custom_call.1} parent=43 // pred_fallthru
          _
      $region44: #{tpu_custom_call.1} parent=5 // pred_fallthru
        _
    $region6: #{tpu_custom_call.1} parent=1 // loop_footer
      %s21 = sadd.s32 1, %s17
    $region7: #{tpu_custom_call.1} parent=1 // loop_footer_branch
      %16 = sbr.rel target = $region3
    $region8: #{tpu_custom_call.1} parent=1 // loop_exit
      _
    %311 = vsyncpa [#allocation3], 1
    %s312 = scalar_lea.sflag [#allocation3], 1
    %313 = vsyncpa %s312, 1
    %314 = vsyncpa [#allocation6], 1
    %s315 = scalar_lea.sflag [#allocation6], 1
    %316 = vsyncpa %s315, 1
    %317 = vsyncpa [#allocation4], 1
    %s318 = scalar_lea.sflag [#allocation4], 1
    %319 = vsyncpa %s318, 1

</llo_original>
